<compile_context>
chip_gen: v7x
topology: tpu7x:2x2x1
jax: 0.10.0
libtpu: 0.0.40
codegen_flags: <defaults>
</compile_context>

<pallas_src>
import jax
import jax.numpy as jnp
from jax.experimental import pallas as pl
from jax.experimental.pallas import tpu as pltpu


def mlp_kernel(x_ref, y_ref,
               w1x_ref, w1y_ref, b1_ref,
               w2_ref, b2_ref, w3_ref, b3_ref, w4_ref, b4_ref,
               o_ref):
    x = x_ref[...]                       # (1, tm) f32, batch on lanes
    y = y_ref[...]                       # (1, tm) f32

    # Layer 1 (in_features=2): VPU broadcast-MAC instead of a K=2 MXU matmul.
    h1 = jnp.maximum(w1x_ref[...] * x + w1y_ref[...] * y + b1_ref[...], 0.0)   # (128, tm) f32

    # Layers 2-4 on the MXU: bf16 operands, f32 accumulation, bias+ReLU in f32.
    h2 = jnp.dot(w2_ref[...], h1.astype(jnp.bfloat16),
                 preferred_element_type=jnp.float32)
    h2 = jnp.maximum(h2 + b2_ref[...], 0.0)                                    # (64, tm) f32
    h3 = jnp.dot(w3_ref[...], h2.astype(jnp.bfloat16),
                 preferred_element_type=jnp.float32)
    h3 = jnp.maximum(h3 + b3_ref[...], 0.0)                                    # (64, tm) f32
    out = jnp.dot(w4_ref[...], h3.astype(jnp.bfloat16),
                  preferred_element_type=jnp.float32)
    o_ref[...] = (out + b4_ref[...]).astype(o_ref.dtype)                       # (1, tm) lane-dense


def net_forward(x, y, kparams, *, block_n=2048):
    """Mirrors Net.forward(x, y): any input shapes are flattened to N samples."""
    xf = x.reshape(-1).astype(jnp.float32)
    yf = y.reshape(-1).astype(jnp.float32)
    N = xf.shape[0]

    # Batch tile: multiple of 128 (lane width), >=128, capped at block_n.
    # block_n=2048 keeps the fused per-tile activation footprint ~3 MiB:
    # comfortably inside the scoped-VMEM default on v5e/v6e (32 MiB) and v7x
    # (32/64 MiB), while amortizing the ~0.35 us per-grid-step overhead.
    tm = max(128, min(block_n, pl.cdiv(N, 128) * 128))
    n_blocks = pl.cdiv(N, tm)
    n_pad = n_blocks * tm

    if n_pad != N:
        xf = jnp.pad(xf, (0, n_pad - N))
        yf = jnp.pad(yf, (0, n_pad - N))
    x2 = xf.reshape(1, n_pad)
    y2 = yf.reshape(1, n_pad)

    w1x, w1y, b1, w2, b2, w3, b3, w4, b4 = kparams
    weights = (w1x, w1y, b1, w2, b2, w3, b3, w4, b4)

    act_spec = pl.BlockSpec((1, tm), lambda i: (0, i))                          # batch-tiled
    weight_specs = [pl.BlockSpec(w.shape, lambda i: (0, 0)) for w in weights]   # VMEM-resident

    flops = 2 * n_pad * (2 * 128 + 128 * 64 + 64 * 64 + 64 * 1)
    bytes_accessed = (x2.size + y2.size + n_pad) * 4 + sum(int(w.nbytes) for w in weights)

    out = pl.pallas_call(
        mlp_kernel,
        out_shape=jax.ShapeDtypeStruct((1, n_pad), jnp.float32),
        grid_spec=pltpu.PrefetchScalarGridSpec(
            num_scalar_prefetch=0,
            grid=(n_blocks,),
            in_specs=[act_spec, act_spec] + weight_specs,
            out_specs=pl.BlockSpec((1, tm), lambda i: (0, i)),
        ),
        compiler_params=pltpu.CompilerParams(
            # Batch tiles are independent -> shard across both TCs on v7x.
            dimension_semantics=("parallel",),
        ),
        cost_estimate=pl.CostEstimate(
            flops=flops, transcendentals=0, bytes_accessed=bytes_accessed),
    )(x2, y2, *weights)

    return out[0, :N].reshape(N, 1)


def init_params(key):
    """nn.Linear-style init: weight (out, in), bias (out,), U(-1/sqrt(in), 1/sqrt(in))."""
    layer_shapes = [(128, 2), (64, 128), (64, 64), (1, 64)]
    params = []
    for dout, din in layer_shapes:
        key, kw, kb = jax.random.split(key, 3)
        bound = 1.0 / (din ** 0.5)
        w = jax.random.uniform(kw, (dout, din), jnp.float32, -bound, bound)
        b = jax.random.uniform(kb, (dout,), jnp.float32, -bound, bound)
        params.append((w, b))
    return params


def prepare_params(params):
    """Kernel layout: layer-1 weight split into its two input columns (VPU path,
    f32); MXU-layer weights in bf16; biases as f32 (out, 1) columns."""
    (w1, b1), (w2, b2), (w3, b3), (w4, b4) = params
    return (
        w1[:, 0:1], w1[:, 1:2], b1[:, None],
        w2.astype(jnp.bfloat16), b2[:, None],
        w3.astype(jnp.bfloat16), b3[:, None],
        w4.astype(jnp.bfloat16), b4[:, None],
    )


def reference_forward(x, y, kparams):
    """Same math as the kernel (incl. bf16 MXU operands) in plain JAX."""
    w1x, w1y, b1, w2, b2, w3, b3, w4, b4 = kparams
    xr = x.reshape(1, -1).astype(jnp.float32)
    yr = y.reshape(1, -1).astype(jnp.float32)
    h1 = jnp.maximum(w1x * xr + w1y * yr + b1, 0.0)
    h2 = jnp.maximum(
        jnp.dot(w2, h1.astype(jnp.bfloat16), preferred_element_type=jnp.float32) + b2, 0.0)
    h3 = jnp.maximum(
        jnp.dot(w3, h2.astype(jnp.bfloat16), preferred_element_type=jnp.float32) + b3, 0.0)
    out = jnp.dot(w4, h3.astype(jnp.bfloat16), preferred_element_type=jnp.float32) + b4
    return out.reshape(-1, 1)


if __name__ == "__main__":
    key = jax.random.PRNGKey(0)
    kx, ky, kx2, ky2, kp = jax.random.split(key, 5)

    params = prepare_params(init_params(kp))

    # Small inputs consistent with forward(): x.view(-1,1)/y.view(-1,1) -> N samples.
    N = 8
    x = jax.random.normal(kx, (N,), jnp.float32)
    y = jax.random.normal(ky, (N,), jnp.float32)

    out = net_forward(x, y, params)
    jax.block_until_ready(out)
    ref = reference_forward(x, y, params)
    assert out.shape == (N, 1)
    assert jnp.allclose(out, ref, atol=1e-2, rtol=1e-2)

    # Exercise the multi-block pipelined path + ragged last-tile padding.
    N2 = 300
    xb = jax.random.normal(kx2, (N2,), jnp.float32)
    yb = jax.random.normal(ky2, (N2,), jnp.float32)
    out2 = net_forward(xb, yb, params, block_n=128)   # 3 batch tiles of 128
    jax.block_until_ready(out2)
    ref2 = reference_forward(xb, yb, params)
    assert out2.shape == (N2, 1)
    assert jnp.allclose(out2, ref2, atol=1e-2, rtol=1e-2)

    print("KERNEL_OK")
</pallas_src>

<mosaic_0001>
module attributes {stable_mosaic.version = 11 : i64} {
  func.func @mlp_kernel(%arg0: i32, %arg1: memref<1x128xf32, #tpu.memory_space<vmem>>, %arg2: memref<1x128xf32, #tpu.memory_space<vmem>>, %arg3: memref<128x1xf32, #tpu.memory_space<vmem>>, %arg4: memref<128x1xf32, #tpu.memory_space<vmem>>, %arg5: memref<128x1xf32, #tpu.memory_space<vmem>>, %arg6: memref<64x128xbf16, #tpu.memory_space<vmem>>, %arg7: memref<64x1xf32, #tpu.memory_space<vmem>>, %arg8: memref<64x64xbf16, #tpu.memory_space<vmem>>, %arg9: memref<64x1xf32, #tpu.memory_space<vmem>>, %arg10: memref<1x64xbf16, #tpu.memory_space<vmem>>, %arg11: memref<1x1xf32, #tpu.memory_space<vmem>>, %arg12: memref<1x128xf32, #tpu.memory_space<vmem>>) attributes {dimension_semantics = [#tpu.dimension_semantics<parallel>], iteration_bounds = array<i64: 1>, scalar_prefetch = 0 : i64, scratch_operands = 0 : i64, tpu.core_type = #tpu.core_type<tc>, window_params = [{transform_indices = @transform_0, window_bounds = array<i64: 1, 128>}, {transform_indices = @transform_1, window_bounds = array<i64: 1, 128>}, {pipeline_mode = #tpu.pipeline_mode<synchronous>, transform_indices = @transform_2, window_bounds = array<i64: 128, 1>}, {pipeline_mode = #tpu.pipeline_mode<synchronous>, transform_indices = @transform_3, window_bounds = array<i64: 128, 1>}, {pipeline_mode = #tpu.pipeline_mode<synchronous>, transform_indices = @transform_4, window_bounds = array<i64: 128, 1>}, {pipeline_mode = #tpu.pipeline_mode<synchronous>, transform_indices = @transform_5, window_bounds = array<i64: 64, 128>}, {pipeline_mode = #tpu.pipeline_mode<synchronous>, transform_indices = @transform_6, window_bounds = array<i64: 64, 1>}, {pipeline_mode = #tpu.pipeline_mode<synchronous>, transform_indices = @transform_7, window_bounds = array<i64: 64, 64>}, {pipeline_mode = #tpu.pipeline_mode<synchronous>, transform_indices = @transform_8, window_bounds = array<i64: 64, 1>}, {pipeline_mode = #tpu.pipeline_mode<synchronous>, transform_indices = @transform_9, window_bounds = array<i64: 1, 64>}, {pipeline_mode = #tpu.pipeline_mode<synchronous>, transform_indices = @transform_10, window_bounds = array<i64: 1, 1>}, {transform_indices = @transform_11, window_bounds = array<i64: 1, 128>}]} {
    %c0 = arith.constant 0 : index
    %c0_0 = arith.constant 0 : index
    %0 = vector.load %arg1[%c0, %c0_0] : memref<1x128xf32, #tpu.memory_space<vmem>>, vector<1x128xf32>
    %c0_1 = arith.constant 0 : index
    %c0_2 = arith.constant 0 : index
    %1 = vector.load %arg2[%c0_1, %c0_2] : memref<1x128xf32, #tpu.memory_space<vmem>>, vector<1x128xf32>
    %c0_3 = arith.constant 0 : index
    %c0_4 = arith.constant 0 : index
    %2 = vector.load %arg3[%c0_3, %c0_4] : memref<128x1xf32, #tpu.memory_space<vmem>>, vector<128x1xf32>
    %3 = vector.broadcast %2 : vector<128x1xf32> to vector<128x128xf32>
    %4 = vector.broadcast %0 : vector<1x128xf32> to vector<128x128xf32>
    %5 = arith.mulf %3, %4 : vector<128x128xf32>
    %c0_5 = arith.constant 0 : index
    %c0_6 = arith.constant 0 : index
    %6 = vector.load %arg4[%c0_5, %c0_6] : memref<128x1xf32, #tpu.memory_space<vmem>>, vector<128x1xf32>
    %7 = vector.broadcast %6 : vector<128x1xf32> to vector<128x128xf32>
    %8 = vector.broadcast %1 : vector<1x128xf32> to vector<128x128xf32>
    %9 = arith.mulf %7, %8 : vector<128x128xf32>
    %10 = arith.addf %5, %9 : vector<128x128xf32>
    %c0_7 = arith.constant 0 : index
    %c0_8 = arith.constant 0 : index
    %11 = vector.load %arg5[%c0_7, %c0_8] : memref<128x1xf32, #tpu.memory_space<vmem>>, vector<128x1xf32>
    %12 = vector.broadcast %11 : vector<128x1xf32> to vector<128x128xf32>
    %13 = arith.addf %10, %12 : vector<128x128xf32>
    %cst = arith.constant 0.000000e+00 : f32
    %14 = vector.broadcast %cst : f32 to vector<128x128xf32>
    %15 = arith.maximumf %13, %14 : vector<128x128xf32>
    %c0_9 = arith.constant 0 : index
    %c0_10 = arith.constant 0 : index
    %16 = vector.load %arg6[%c0_9, %c0_10] : memref<64x128xbf16, #tpu.memory_space<vmem>>, vector<64x128xbf16>
    %17 = arith.truncf %15 : vector<128x128xf32> to vector<128x128xbf16>
    %cst_11 = arith.constant dense<0.000000e+00> : vector<64x128xf32>
    %18 = tpu.matmul %16, %17, %cst_11 {dimension_numbers = #tpu.dot_dimension_numbers<[1], [0], [0], [1], [0, 0, 1, 1], [], []>} : vector<64x128xbf16>, vector<128x128xbf16>, vector<64x128xf32> -> vector<64x128xf32>
    %c0_12 = arith.constant 0 : index
    %c0_13 = arith.constant 0 : index
    %19 = vector.load %arg7[%c0_12, %c0_13] : memref<64x1xf32, #tpu.memory_space<vmem>>, vector<64x1xf32>
    %20 = vector.broadcast %19 : vector<64x1xf32> to vector<64x128xf32>
    %21 = arith.addf %18, %20 : vector<64x128xf32>
    %cst_14 = arith.constant 0.000000e+00 : f32
    %22 = vector.broadcast %cst_14 : f32 to vector<64x128xf32>
    %23 = arith.maximumf %21, %22 : vector<64x128xf32>
    %c0_15 = arith.constant 0 : index
    %c0_16 = arith.constant 0 : index
    %24 = vector.load %arg8[%c0_15, %c0_16] : memref<64x64xbf16, #tpu.memory_space<vmem>>, vector<64x64xbf16>
    %25 = arith.truncf %23 : vector<64x128xf32> to vector<64x128xbf16>
    %cst_17 = arith.constant dense<0.000000e+00> : vector<64x128xf32>
    %26 = tpu.matmul %24, %25, %cst_17 {dimension_numbers = #tpu.dot_dimension_numbers<[1], [0], [0], [1], [0, 0, 1, 1], [], []>} : vector<64x64xbf16>, vector<64x128xbf16>, vector<64x128xf32> -> vector<64x128xf32>
    %c0_18 = arith.constant 0 : index
    %c0_19 = arith.constant 0 : index
    %27 = vector.load %arg9[%c0_18, %c0_19] : memref<64x1xf32, #tpu.memory_space<vmem>>, vector<64x1xf32>
    %28 = vector.broadcast %27 : vector<64x1xf32> to vector<64x128xf32>
    %29 = arith.addf %26, %28 : vector<64x128xf32>
    %cst_20 = arith.constant 0.000000e+00 : f32
    %30 = vector.broadcast %cst_20 : f32 to vector<64x128xf32>
    %31 = arith.maximumf %29, %30 : vector<64x128xf32>
    %c0_21 = arith.constant 0 : index
    %c0_22 = arith.constant 0 : index
    %32 = vector.load %arg10[%c0_21, %c0_22] : memref<1x64xbf16, #tpu.memory_space<vmem>>, vector<1x64xbf16>
    %33 = arith.truncf %31 : vector<64x128xf32> to vector<64x128xbf16>
    %cst_23 = arith.constant dense<0.000000e+00> : vector<1x128xf32>
    %34 = tpu.matmul %32, %33, %cst_23 {dimension_numbers = #tpu.dot_dimension_numbers<[1], [0], [0], [1], [0, 0, 1, 1], [], []>} : vector<1x64xbf16>, vector<64x128xbf16>, vector<1x128xf32> -> vector<1x128xf32>
    %c0_24 = arith.constant 0 : index
    %c0_25 = arith.constant 0 : index
    %35 = vector.load %arg11[%c0_24, %c0_25] : memref<1x1xf32, #tpu.memory_space<vmem>>, vector<1x1xf32>
    %36 = vector.broadcast %35 : vector<1x1xf32> to vector<1x128xf32>
    %37 = arith.addf %34, %36 : vector<1x128xf32>
    %c0_26 = arith.constant 0 : index
    %c0_27 = arith.constant 0 : index
    %38 = vector.load %arg12[%c0_26, %c0_27] : memref<1x128xf32, #tpu.memory_space<vmem>>, vector<1x128xf32>
    tpu.vector_store %arg12[%c0_26, %c0_27], %37 {strides = array<i32>} : memref<1x128xf32, #tpu.memory_space<vmem>>, vector<1x128xf32>,
    return
  }
  func.func @transform_0(%arg0: i32) -> (i32, i32) {
    %c0_i32 = arith.constant 0 : i32
    %c0_i32_0 = arith.constant 0 : i32
    return %c0_i32, %arg0 : i32, i32
  }
  func.func @transform_1(%arg0: i32) -> (i32, i32) {
    %c0_i32 = arith.constant 0 : i32
    %c0_i32_0 = arith.constant 0 : i32
    return %c0_i32, %arg0 : i32, i32
  }
  func.func @transform_2(%arg0: i32) -> (i32, i32) {
    %c0_i32 = arith.constant 0 : i32
    %c0_i32_0 = arith.constant 0 : i32
    %c0_i32_1 = arith.constant 0 : i32
    return %c0_i32, %c0_i32_0 : i32, i32
  }
  func.func @transform_3(%arg0: i32) -> (i32, i32) {
    %c0_i32 = arith.constant 0 : i32
    %c0_i32_0 = arith.constant 0 : i32
    %c0_i32_1 = arith.constant 0 : i32
    return %c0_i32, %c0_i32_0 : i32, i32
  }
  func.func @transform_4(%arg0: i32) -> (i32, i32) {
    %c0_i32 = arith.constant 0 : i32
    %c0_i32_0 = arith.constant 0 : i32
    %c0_i32_1 = arith.constant 0 : i32
    return %c0_i32, %c0_i32_0 : i32, i32
  }
  func.func @transform_5(%arg0: i32) -> (i32, i32) {
    %c0_i32 = arith.constant 0 : i32
    %c0_i32_0 = arith.constant 0 : i32
    %c0_i32_1 = arith.constant 0 : i32
    return %c0_i32, %c0_i32_0 : i32, i32
  }
  func.func @transform_6(%arg0: i32) -> (i32, i32) {
    %c0_i32 = arith.constant 0 : i32
    %c0_i32_0 = arith.constant 0 : i32
    %c0_i32_1 = arith.constant 0 : i32
    return %c0_i32, %c0_i32_0 : i32, i32
  }
  func.func @transform_7(%arg0: i32) -> (i32, i32) {
    %c0_i32 = arith.constant 0 : i32
    %c0_i32_0 = arith.constant 0 : i32
    %c0_i32_1 = arith.constant 0 : i32
    return %c0_i32, %c0_i32_0 : i32, i32
  }
  func.func @transform_8(%arg0: i32) -> (i32, i32) {
    %c0_i32 = arith.constant 0 : i32
    %c0_i32_0 = arith.constant 0 : i32
    %c0_i32_1 = arith.constant 0 : i32
    return %c0_i32, %c0_i32_0 : i32, i32
  }
  func.func @transform_9(%arg0: i32) -> (i32, i32) {
    %c0_i32 = arith.constant 0 : i32
    %c0_i32_0 = arith.constant 0 : i32
    %c0_i32_1 = arith.constant 0 : i32
    return %c0_i32, %c0_i32_0 : i32, i32
  }
  func.func @transform_10(%arg0: i32) -> (i32, i32) {
    %c0_i32 = arith.constant 0 : i32
    %c0_i32_0 = arith.constant 0 : i32
    %c0_i32_1 = arith.constant 0 : i32
    return %c0_i32, %c0_i32_0 : i32, i32
  }
  func.func @transform_11(%arg0: i32) -> (i32, i32) {
    %c0_i32 = arith.constant 0 : i32
    %c0_i32_0 = arith.constant 0 : i32
    return %c0_i32, %arg0 : i32, i32
  }
}

</mosaic_0001>

<llo_original>
// kernel: tpu_custom_call.1
$region0: #{tpu_custom_call.1}
  #allocation0 [shape = 'u32[]', space=smem, size = 0x4, offset = 0x4, fixed_abs, tag = 'smem constant byte address 0x4 - core index']
  #allocation1 [shape = 'u32[144,128]{1,0:T(1,128)}', space=vmem, size = 0x12000, scoped, tag = 'internal scratch']
  #allocation2 [shape = 'f32[1,1]{1,0:T(1,128)S(1)}', space=vmem, size = 0x200, scoped, tag = 'scoped memory for tpu_custom_call.1']
  %s0 = inlined_call_operand.vmem [shape: f32[1,128], index: 0, kind: input, shape index: {}]
  %s1 = inlined_call_operand.vmem [shape: f32[1,128], index: 1, kind: input, shape index: {}]
  %s2 = inlined_call_operand.vmem [shape: f32[128,1], index: 2, kind: input, shape index: {}]
  %s3 = inlined_call_operand.vmem [shape: f32[128,1], index: 3, kind: input, shape index: {}]
  %s4 = inlined_call_operand.vmem [shape: f32[128,1], index: 4, kind: input, shape index: {}]
  %s5 = inlined_call_operand.vmem [shape: bf16[64,128], index: 5, kind: input, shape index: {}]
  %s6 = inlined_call_operand.vmem [shape: f32[64,1], index: 6, kind: input, shape index: {}]
  %s7 = inlined_call_operand.vmem [shape: bf16[64,64], index: 7, kind: input, shape index: {}]
  %s8 = inlined_call_operand.vmem [shape: f32[64,1], index: 8, kind: input, shape index: {}]
  %s9 = inlined_call_operand.vmem [shape: bf16[1,64], index: 9, kind: input, shape index: {}]
  %s10 = inlined_call_operand.<no memory space> [shape: f32[1,1], index: 10, kind: input, shape index: {}]
  %s11 = inlined_call_operand.hbm [shape: f32[1,128], index: 11, kind: output, shape index: {}]
  %s12 = sld [smem:[#allocation0]]
  $region54: #{tpu_custom_call.1} parent=0
    _
  %s14 = ssub.s32 1, %s12
  %s15 = scalar_select 0, %s14, %s12
  %v16 = vstv %s10
  %17 = vst [vmem:[#allocation2] sm:$0x1] %v16
  $region1: #{tpu_custom_call.1} parent=0
    #allocation3 [shape = 'u8[512]{0}', space=vmem, size = 0x400, scoped, tag = 'output window, operand 0, single buffered']
    #allocation4 [shape = 's32[1]{0}', space=sflag, size = 0x4, scoped, tag = 'scoped memory for tpu_custom_call.1']
    %18 = vsyncpa [#allocation4], 0
    // Predicated region
    $region2: #{tpu_custom_call.1} parent=1 // pred_check
      _
    $region3: #{tpu_custom_call.1} parent=1 // pred_check_branch
      %20 = sbr.rel (0) target = $region5
    $region4: #{tpu_custom_call.1} parent=1 // pred_region
      _
    $region5: #{tpu_custom_call.1} parent=1 // pred_fallthru
      _
    // Predicated region
    $region6: #{tpu_custom_call.1} parent=1 // pred_check
      _
    $region7: #{tpu_custom_call.1} parent=1 // pred_check_branch
      %22 = sbr.rel (0) target = $region9
    $region8: #{tpu_custom_call.1} parent=1 // pred_region
      _
    $region9: #{tpu_custom_call.1} parent=1 // pred_fallthru
      _
    // Predicated region
    $region10: #{tpu_custom_call.1} parent=1 // pred_check
      _
    $region11: #{tpu_custom_call.1} parent=1 // pred_check_branch
      %24 = sbr.rel (0) target = $region13
    $region12: #{tpu_custom_call.1} parent=1 // pred_region
      _
    $region13: #{tpu_custom_call.1} parent=1 // pred_fallthru
      _
    // Predicated region
    $region14: #{tpu_custom_call.1} parent=1 // pred_check
      _
    $region15: #{tpu_custom_call.1} parent=1 // pred_check_branch
      %26 = sbr.rel (0) target = $region17
    $region16: #{tpu_custom_call.1} parent=1 // pred_region
      _
    $region17: #{tpu_custom_call.1} parent=1 // pred_fallthru
      _
    // Predicated region
    $region18: #{tpu_custom_call.1} parent=1 // pred_check
      _
    $region19: #{tpu_custom_call.1} parent=1 // pred_check_branch
      %28 = sbr.rel (0) target = $region21
    $region20: #{tpu_custom_call.1} parent=1 // pred_region
      _
    $region21: #{tpu_custom_call.1} parent=1 // pred_fallthru
      _
    // Predicated region
    $region22: #{tpu_custom_call.1} parent=1 // pred_check
      _
    $region23: #{tpu_custom_call.1} parent=1 // pred_check_branch
      %30 = sbr.rel (0) target = $region25
    $region24: #{tpu_custom_call.1} parent=1 // pred_region
      _
    $region25: #{tpu_custom_call.1} parent=1 // pred_fallthru
      _
    // Predicated region
    $region26: #{tpu_custom_call.1} parent=1 // pred_check
      _
    $region27: #{tpu_custom_call.1} parent=1 // pred_check_branch
      %32 = sbr.rel (0) target = $region29
    $region28: #{tpu_custom_call.1} parent=1 // pred_region
      _
    $region29: #{tpu_custom_call.1} parent=1 // pred_fallthru
      _
    // Predicated region
    $region30: #{tpu_custom_call.1} parent=1 // pred_check
      _
    $region31: #{tpu_custom_call.1} parent=1 // pred_check_branch
      %34 = sbr.rel (0) target = $region33
    $region32: #{tpu_custom_call.1} parent=1 // pred_region
      _
    $region33: #{tpu_custom_call.1} parent=1 // pred_fallthru
      _
    // Predicated region
    $region34: #{tpu_custom_call.1} parent=1 // pred_check
      _
    $region35: #{tpu_custom_call.1} parent=1 // pred_check_branch
      %36 = sbr.rel (0) target = $region37
    $region36: #{tpu_custom_call.1} parent=1 // pred_region
      _
    $region37: #{tpu_custom_call.1} parent=1 // pred_fallthru
      _
    // Predicated region
    $region38: #{tpu_custom_call.1} parent=1 // pred_check
      _
    $region39: #{tpu_custom_call.1} parent=1 // pred_check_branch
      %38 = sbr.rel (0) target = $region41
    $region40: #{tpu_custom_call.1} parent=1 // pred_region
      _
    $region41: #{tpu_custom_call.1} parent=1 // pred_fallthru
      _
    // Predicated region
    $region42: #{tpu_custom_call.1} parent=1 // pred_check
      _
    $region43: #{tpu_custom_call.1} parent=1 // pred_check_branch
      %40 = sbr.rel (0) target = $region45
    $region44: #{tpu_custom_call.1} parent=1 // pred_region
      _
    $region45: #{tpu_custom_call.1} parent=1 // pred_fallthru
      _
    %v42 = vld [vmem:[%s0] sm:$0x1]
    %v43 = vld [vmem:[%s1] sm:$0x1]
    %v44 = vld [vmem:[%s2] sm:$0xff]
    %v45 = vld [vmem:[%s2 + $0x8] sm:$0xff]
    %v46 = vld [vmem:[%s2 + $0x10] sm:$0xff]
    %v47 = vld [vmem:[%s2 + $0x18] sm:$0xff]
    %v48 = vld [vmem:[%s2 + $0x20] sm:$0xff]
    %v49 = vld [vmem:[%s2 + $0x28] sm:$0xff]
    %v50 = vld [vmem:[%s2 + $0x30] sm:$0xff]
    %v51 = vld [vmem:[%s2 + $0x38] sm:$0xff]
    %v52 = vld [vmem:[%s2 + $0x40] sm:$0xff]
    %v53 = vld [vmem:[%s2 + $0x48] sm:$0xff]
    %v54 = vld [vmem:[%s2 + $0x50] sm:$0xff]
    %v55 = vld [vmem:[%s2 + $0x58] sm:$0xff]
    %v56 = vld [vmem:[%s2 + $0x60] sm:$0xff]
    %v57 = vld [vmem:[%s2 + $0x68] sm:$0xff]
    %v58 = vld [vmem:[%s2 + $0x70] sm:$0xff]
    %v59 = vld [vmem:[%s2 + $0x78] sm:$0xff]
    %61 = vset.pattern.permute.xlu0 0
    %62 = vperm.xlu0 %61, %v44
    %v63 = vpop.permute.xlu0 %62
    %66 = vset.pattern.permute.xlu0 0
    %67 = vperm.xlu0 %66, %v45
    %v68 = vpop.permute.xlu0 %67
    %71 = vset.pattern.permute.xlu0 0
    %72 = vperm.xlu0 %71, %v46
    %v73 = vpop.permute.xlu0 %72
    %76 = vset.pattern.permute.xlu0 0
    %77 = vperm.xlu0 %76, %v47
    %v78 = vpop.permute.xlu0 %77
    %81 = vset.pattern.permute.xlu0 0
    %82 = vperm.xlu0 %81, %v48
    %v83 = vpop.permute.xlu0 %82
    %86 = vset.pattern.permute.xlu0 0
    %87 = vperm.xlu0 %86, %v49
    %v88 = vpop.permute.xlu0 %87
    %91 = vset.pattern.permute.xlu0 0
    %92 = vperm.xlu0 %91, %v50
    %v93 = vpop.permute.xlu0 %92
    %96 = vset.pattern.permute.xlu0 0
    %97 = vperm.xlu0 %96, %v51
    %v98 = vpop.permute.xlu0 %97
    %101 = vset.pattern.permute.xlu0 0
    %102 = vperm.xlu0 %101, %v52
    %v103 = vpop.permute.xlu0 %102
    %106 = vset.pattern.permute.xlu0 0
    %107 = vperm.xlu0 %106, %v53
    %v108 = vpop.permute.xlu0 %107
    %111 = vset.pattern.permute.xlu0 0
    %112 = vperm.xlu0 %111, %v54
    %v113 = vpop.permute.xlu0 %112
    %116 = vset.pattern.permute.xlu0 0
    %117 = vperm.xlu0 %116, %v55
    %v118 = vpop.permute.xlu0 %117
    %121 = vset.pattern.permute.xlu0 0
    %122 = vperm.xlu0 %121, %v56
    %v123 = vpop.permute.xlu0 %122
    %126 = vset.pattern.permute.xlu0 0
    %127 = vperm.xlu0 %126, %v57
    %v128 = vpop.permute.xlu0 %127
    %131 = vset.pattern.permute.xlu0 0
    %132 = vperm.xlu0 %131, %v58
    %v133 = vpop.permute.xlu0 %132
    %136 = vset.pattern.permute.xlu0 0
    %137 = vperm.xlu0 %136, %v59
    %v138 = vpop.permute.xlu0 %137
    %v141 = vlaneseq
    %v142 = vshrl.u32 %v141, 7
    %v143 = vsub.s32 0, %v142
    %v144 = vrot.slane %v42, %v143
    %v146 = vmul.f32 %v63, %v144
    %v147 = vmul.f32 %v68, %v144
    %v148 = vmul.f32 %v73, %v144
    %v149 = vmul.f32 %v78, %v144
    %v150 = vmul.f32 %v83, %v144
    %v151 = vmul.f32 %v88, %v144
    %v152 = vmul.f32 %v93, %v144
    %v153 = vmul.f32 %v98, %v144
    %v154 = vmul.f32 %v103, %v144
    %v155 = vmul.f32 %v108, %v144
    %v156 = vmul.f32 %v113, %v144
    %v157 = vmul.f32 %v118, %v144
    %v158 = vmul.f32 %v123, %v144
    %v159 = vmul.f32 %v128, %v144
    %v160 = vmul.f32 %v133, %v144
    %v161 = vmul.f32 %v138, %v144
    %v162 = vld [vmem:[%s3] sm:$0xff]
    %v163 = vld [vmem:[%s3 + $0x8] sm:$0xff]
    %v164 = vld [vmem:[%s3 + $0x10] sm:$0xff]
    %v165 = vld [vmem:[%s3 + $0x18] sm:$0xff]
    %v166 = vld [vmem:[%s3 + $0x20] sm:$0xff]
    %v167 = vld [vmem:[%s3 + $0x28] sm:$0xff]
    %v168 = vld [vmem:[%s3 + $0x30] sm:$0xff]
    %v169 = vld [vmem:[%s3 + $0x38] sm:$0xff]
    %v170 = vld [vmem:[%s3 + $0x40] sm:$0xff]
    %v171 = vld [vmem:[%s3 + $0x48] sm:$0xff]
    %v172 = vld [vmem:[%s3 + $0x50] sm:$0xff]
    %v173 = vld [vmem:[%s3 + $0x58] sm:$0xff]
    %v174 = vld [vmem:[%s3 + $0x60] sm:$0xff]
    %v175 = vld [vmem:[%s3 + $0x68] sm:$0xff]
    %v176 = vld [vmem:[%s3 + $0x70] sm:$0xff]
    %v177 = vld [vmem:[%s3 + $0x78] sm:$0xff]
    %179 = vset.pattern.permute.xlu0 0
    %180 = vperm.xlu0 %179, %v162
    %v181 = vpop.permute.xlu0 %180
    %184 = vset.pattern.permute.xlu0 0
    %185 = vperm.xlu0 %184, %v163
    %v186 = vpop.permute.xlu0 %185
    %189 = vset.pattern.permute.xlu0 0
    %190 = vperm.xlu0 %189, %v164
    %v191 = vpop.permute.xlu0 %190
    %194 = vset.pattern.permute.xlu0 0
    %195 = vperm.xlu0 %194, %v165
    %v196 = vpop.permute.xlu0 %195
    %199 = vset.pattern.permute.xlu0 0
    %200 = vperm.xlu0 %199, %v166
    %v201 = vpop.permute.xlu0 %200
    %204 = vset.pattern.permute.xlu0 0
    %205 = vperm.xlu0 %204, %v167
    %v206 = vpop.permute.xlu0 %205
    %209 = vset.pattern.permute.xlu0 0
    %210 = vperm.xlu0 %209, %v168
    %v211 = vpop.permute.xlu0 %210
    %214 = vset.pattern.permute.xlu0 0
    %215 = vperm.xlu0 %214, %v169
    %v216 = vpop.permute.xlu0 %215
    %219 = vset.pattern.permute.xlu0 0
    %220 = vperm.xlu0 %219, %v170
    %v221 = vpop.permute.xlu0 %220
    %224 = vset.pattern.permute.xlu0 0
    %225 = vperm.xlu0 %224, %v171
    %v226 = vpop.permute.xlu0 %225
    %229 = vset.pattern.permute.xlu0 0
    %230 = vperm.xlu0 %229, %v172
    %v231 = vpop.permute.xlu0 %230
    %234 = vset.pattern.permute.xlu0 0
    %235 = vperm.xlu0 %234, %v173
    %v236 = vpop.permute.xlu0 %235
    %239 = vset.pattern.permute.xlu0 0
    %240 = vperm.xlu0 %239, %v174
    %v241 = vpop.permute.xlu0 %240
    %244 = vset.pattern.permute.xlu0 0
    %245 = vperm.xlu0 %244, %v175
    %v246 = vpop.permute.xlu0 %245
    %249 = vset.pattern.permute.xlu0 0
    %250 = vperm.xlu0 %249, %v176
    %v251 = vpop.permute.xlu0 %250
    %254 = vset.pattern.permute.xlu0 0
    %255 = vperm.xlu0 %254, %v177
    %v256 = vpop.permute.xlu0 %255
    %v259 = vlaneseq
    %v260 = vshrl.u32 %v259, 7
    %v261 = vsub.s32 0, %v260
    %v262 = vrot.slane %v43, %v261
    %v264 = vmul.f32 %v181, %v262
    %v265 = vmul.f32 %v186, %v262
    %v266 = vmul.f32 %v191, %v262
    %v267 = vmul.f32 %v196, %v262
    %v268 = vmul.f32 %v201, %v262
    %v269 = vmul.f32 %v206, %v262
    %v270 = vmul.f32 %v211, %v262
    %v271 = vmul.f32 %v216, %v262
    %v272 = vmul.f32 %v221, %v262
    %v273 = vmul.f32 %v226, %v262
    %v274 = vmul.f32 %v231, %v262
    %v275 = vmul.f32 %v236, %v262
    %v276 = vmul.f32 %v241, %v262
    %v277 = vmul.f32 %v246, %v262
    %v278 = vmul.f32 %v251, %v262
    %v279 = vmul.f32 %v256, %v262
    %v280 = vadd.f32 %v146, %v264
    %v281 = vadd.f32 %v147, %v265
    %v282 = vadd.f32 %v148, %v266
    %v283 = vadd.f32 %v149, %v267
    %v284 = vadd.f32 %v150, %v268
    %v285 = vadd.f32 %v151, %v269
    %v286 = vadd.f32 %v152, %v270
    %v287 = vadd.f32 %v153, %v271
    %v288 = vadd.f32 %v154, %v272
    %v289 = vadd.f32 %v155, %v273
    %v290 = vadd.f32 %v156, %v274
    %v291 = vadd.f32 %v157, %v275
    %v292 = vadd.f32 %v158, %v276
    %v293 = vadd.f32 %v159, %v277
    %v294 = vadd.f32 %v160, %v278
    %v295 = vadd.f32 %v161, %v279
    %v296 = vld [vmem:[%s4] sm:$0xff]
    %v297 = vld [vmem:[%s4 + $0x8] sm:$0xff]
    %v298 = vld [vmem:[%s4 + $0x10] sm:$0xff]
    %v299 = vld [vmem:[%s4 + $0x18] sm:$0xff]
    %v300 = vld [vmem:[%s4 + $0x20] sm:$0xff]
    %v301 = vld [vmem:[%s4 + $0x28] sm:$0xff]
    %v302 = vld [vmem:[%s4 + $0x30] sm:$0xff]
    %v303 = vld [vmem:[%s4 + $0x38] sm:$0xff]
    %v304 = vld [vmem:[%s4 + $0x40] sm:$0xff]
    %v305 = vld [vmem:[%s4 + $0x48] sm:$0xff]
    %v306 = vld [vmem:[%s4 + $0x50] sm:$0xff]
    %v307 = vld [vmem:[%s4 + $0x58] sm:$0xff]
    %v308 = vld [vmem:[%s4 + $0x60] sm:$0xff]
    %v309 = vld [vmem:[%s4 + $0x68] sm:$0xff]
    %v310 = vld [vmem:[%s4 + $0x70] sm:$0xff]
    %v311 = vld [vmem:[%s4 + $0x78] sm:$0xff]
    %313 = vset.pattern.permute.xlu0 0
    %314 = vperm.xlu0 %313, %v296
    %v315 = vpop.permute.xlu0 %314
    %318 = vset.pattern.permute.xlu0 0
    %319 = vperm.xlu0 %318, %v297
    %v320 = vpop.permute.xlu0 %319
    %323 = vset.pattern.permute.xlu0 0
    %324 = vperm.xlu0 %323, %v298
    %v325 = vpop.permute.xlu0 %324
    %328 = vset.pattern.permute.xlu0 0
    %329 = vperm.xlu0 %328, %v299
    %v330 = vpop.permute.xlu0 %329
    %333 = vset.pattern.permute.xlu0 0
    %334 = vperm.xlu0 %333, %v300
    %v335 = vpop.permute.xlu0 %334
    %338 = vset.pattern.permute.xlu0 0
    %339 = vperm.xlu0 %338, %v301
    %v340 = vpop.permute.xlu0 %339
    %343 = vset.pattern.permute.xlu0 0
    %344 = vperm.xlu0 %343, %v302
    %v345 = vpop.permute.xlu0 %344
    %348 = vset.pattern.permute.xlu0 0
    %349 = vperm.xlu0 %348, %v303
    %v350 = vpop.permute.xlu0 %349
    %353 = vset.pattern.permute.xlu0 0
    %354 = vperm.xlu0 %353, %v304
    %v355 = vpop.permute.xlu0 %354
    %358 = vset.pattern.permute.xlu0 0
    %359 = vperm.xlu0 %358, %v305
    %v360 = vpop.permute.xlu0 %359
    %363 = vset.pattern.permute.xlu0 0
    %364 = vperm.xlu0 %363, %v306
    %v365 = vpop.permute.xlu0 %364
    %368 = vset.pattern.permute.xlu0 0
    %369 = vperm.xlu0 %368, %v307
    %v370 = vpop.permute.xlu0 %369
    %373 = vset.pattern.permute.xlu0 0
    %374 = vperm.xlu0 %373, %v308
    %v375 = vpop.permute.xlu0 %374
    %378 = vset.pattern.permute.xlu0 0
    %379 = vperm.xlu0 %378, %v309
    %v380 = vpop.permute.xlu0 %379
    %383 = vset.pattern.permute.xlu0 0
    %384 = vperm.xlu0 %383, %v310
    %v385 = vpop.permute.xlu0 %384
    %388 = vset.pattern.permute.xlu0 0
    %389 = vperm.xlu0 %388, %v311
    %v390 = vpop.permute.xlu0 %389
    %v392 = vadd.f32 %v280, %v315
    %v393 = vadd.f32 %v281, %v320
    %v394 = vadd.f32 %v282, %v325
    %v395 = vadd.f32 %v283, %v330
    %v396 = vadd.f32 %v284, %v335
    %v397 = vadd.f32 %v285, %v340
    %v398 = vadd.f32 %v286, %v345
    %v399 = vadd.f32 %v287, %v350
    %v400 = vadd.f32 %v288, %v355
    %v401 = vadd.f32 %v289, %v360
    %v402 = vadd.f32 %v290, %v365
    %v403 = vadd.f32 %v291, %v370
    %v404 = vadd.f32 %v292, %v375
    %v405 = vadd.f32 %v293, %v380
    %v406 = vadd.f32 %v294, %v385
    %v407 = vadd.f32 %v295, %v390
    %v408 = vmax.f32 %v392, 0.0
    %v409 = vmax.f32 %v393, 0.0
    %v410 = vmax.f32 %v394, 0.0
    %v411 = vmax.f32 %v395, 0.0
    %v412 = vmax.f32 %v396, 0.0
    %v413 = vmax.f32 %v397, 0.0
    %v414 = vmax.f32 %v398, 0.0
    %v415 = vmax.f32 %v399, 0.0
    %v416 = vmax.f32 %v400, 0.0
    %v417 = vmax.f32 %v401, 0.0
    %v418 = vmax.f32 %v402, 0.0
    %v419 = vmax.f32 %v403, 0.0
    %v420 = vmax.f32 %v404, 0.0
    %v421 = vmax.f32 %v405, 0.0
    %v422 = vmax.f32 %v406, 0.0
    %v423 = vmax.f32 %v407, 0.0
    %v424 = vld [vmem:[%s5] sm:$0xf]
    %v425 = vld [vmem:[%s5 + $0x4] sm:$0xf]
    %v426 = vld [vmem:[%s5 + $0x8] sm:$0xf]
    %v427 = vld [vmem:[%s5 + $0xc] sm:$0xf]
    %v428 = vld [vmem:[%s5 + $0x10] sm:$0xf]
    %v429 = vld [vmem:[%s5 + $0x14] sm:$0xf]
    %v430 = vld [vmem:[%s5 + $0x18] sm:$0xf]
    %v431 = vld [vmem:[%s5 + $0x1c] sm:$0xf]
    %v432 = vpack.c.bf16 %v409, %v408
    %v433 = vpack.c.bf16 %v411, %v410
    %v434 = vpack.c.bf16 %v413, %v412
    %v435 = vpack.c.bf16 %v415, %v414
    %v436 = vpack.c.bf16 %v417, %v416
    %v437 = vpack.c.bf16 %v419, %v418
    %v438 = vpack.c.bf16 %v421, %v420
    %v439 = vpack.c.bf16 %v423, %v422
    %v440 = vld [vmem:[%s6] sm:$0xff]
    %v441 = vld [vmem:[%s6 + $0x8] sm:$0xff]
    %v442 = vld [vmem:[%s6 + $0x10] sm:$0xff]
    %v443 = vld [vmem:[%s6 + $0x18] sm:$0xff]
    %v444 = vld [vmem:[%s6 + $0x20] sm:$0xff]
    %v445 = vld [vmem:[%s6 + $0x28] sm:$0xff]
    %v446 = vld [vmem:[%s6 + $0x30] sm:$0xff]
    %v447 = vld [vmem:[%s6 + $0x38] sm:$0xff]
    %449 = vset.pattern.permute.xlu0 0
    %450 = vperm.xlu0 %449, %v440
    %v451 = vpop.permute.xlu0 %450
    %454 = vset.pattern.permute.xlu0 0
    %455 = vperm.xlu0 %454, %v441
    %v456 = vpop.permute.xlu0 %455
    %459 = vset.pattern.permute.xlu0 0
    %460 = vperm.xlu0 %459, %v442
    %v461 = vpop.permute.xlu0 %460
    %464 = vset.pattern.permute.xlu0 0
    %465 = vperm.xlu0 %464, %v443
    %v466 = vpop.permute.xlu0 %465
    %469 = vset.pattern.permute.xlu0 0
    %470 = vperm.xlu0 %469, %v444
    %v471 = vpop.permute.xlu0 %470
    %474 = vset.pattern.permute.xlu0 0
    %475 = vperm.xlu0 %474, %v445
    %v476 = vpop.permute.xlu0 %475
    %479 = vset.pattern.permute.xlu0 0
    %480 = vperm.xlu0 %479, %v446
    %v481 = vpop.permute.xlu0 %480
    %484 = vset.pattern.permute.xlu0 0
    %485 = vperm.xlu0 %484, %v447
    %v486 = vpop.permute.xlu0 %485
    %v496 = vunpack.c.l.b16 %v424
    %v497 = vunpack.c.l.b16 %v425
    %v498 = vunpack.c.l.b16 %v426
    %v499 = vunpack.c.l.b16 %v427
    %v500 = vunpack.c.l.b16 %v428
    %v501 = vunpack.c.l.b16 %v429
    %v502 = vunpack.c.l.b16 %v430
    %v503 = vunpack.c.l.b16 %v431
    %v504 = vpack.c.b16 %v497, %v496
    %v505 = vpack.c.b16 %v499, %v498
    %v506 = vpack.c.b16 %v501, %v500
    %v507 = vpack.c.b16 %v503, %v502
    %512 = vmatprep.subr.bf16.mxu0 0
    %513 = vmatpush1.bf16.msra.mxu0 %v432
    %514 = vmatprep.subr.bf16.mxu0 0
    %515 = vmatpush1.bf16.msra.mxu0 %v433
    %516 = vmatprep.subr.bf16.mxu0 0
    %517 = vmatpush1.bf16.msra.mxu0 %v434
    %518 = vmatprep.subr.bf16.mxu0 0
    %519 = vmatpush1.bf16.msra.mxu0 %v435
    %520 = vmatprep.subr.bf16.mxu0 0
    %521 = vmatpush1.bf16.msra.mxu0 %v436
    %522 = vmatprep.subr.bf16.mxu0 0
    %523 = vmatpush1.bf16.msra.mxu0 %v437
    %524 = vmatprep.subr.bf16.mxu0 0
    %525 = vmatpush1.bf16.msra.mxu0 %v438
    %526 = vmatprep.subr.bf16.mxu0 0
    %527 = vmatpush1.bf16.msra.mxu0 %v439
    %528 = vmatprep.subr.bf16.mxu0 0
    %529 = vmatpush1.bf16.msra.mxu0 0
    %530 = vmatprep.subr.bf16.mxu0 0
    %531 = vmatpush1.bf16.msra.mxu0 0
    %532 = vmatprep.subr.bf16.mxu0 0
    %533 = vmatpush1.bf16.msra.mxu0 0
    %534 = vmatprep.subr.bf16.mxu0 0
    %535 = vmatpush1.bf16.msra.mxu0 0
    %536 = vmatprep.subr.bf16.mxu0 0
    %537 = vmatpush1.bf16.msra.mxu0 0
    %538 = vmatprep.subr.bf16.mxu0 0
    %539 = vmatpush1.bf16.msra.mxu0 0
    %540 = vmatprep.subr.bf16.mxu0 0
    %541 = vmatpush1.bf16.msra.mxu0 0
    %542 = vmatprep.subr.bf16.mxu0 0
    %543 = vmatpush1.bf16.msra.mxu0 0
    %544 = vmatprep.mubr.bf16.mxu0 0
    %545 = vmatmul.mubr.bf16.gmra.mrb[0].mxu0 %v504
    %v546 = vpop.f32.mrb[0].mxu0
    %v547 = vadd.f32 %v451, %v546
    %v548 = vpop.f32.mrb[0].mxu0
    %v549 = vpop.f32.mrb[0].mxu0
    %v550 = vadd.f32 %v456, %v549
    %v551 = vpop.f32.mrb[0].mxu0
    %552 = vmatprep.mubr.bf16.mxu0 0
    %553 = vmatmul.mubr.bf16.gmra.mrb[0].mxu0 %v505
    %v554 = vpop.f32.mrb[0].mxu0
    %v555 = vadd.f32 %v461, %v554
    %v556 = vpop.f32.mrb[0].mxu0
    %v557 = vpop.f32.mrb[0].mxu0
    %v558 = vadd.f32 %v466, %v557
    %v559 = vpop.f32.mrb[0].mxu0
    %560 = vmatprep.mubr.bf16.mxu0 0
    %561 = vmatmul.mubr.bf16.gmra.mrb[0].mxu0 %v506
    %v562 = vpop.f32.mrb[0].mxu0
    %v563 = vadd.f32 %v471, %v562
    %v564 = vpop.f32.mrb[0].mxu0
    %v565 = vpop.f32.mrb[0].mxu0
    %v566 = vadd.f32 %v476, %v565
    %v567 = vpop.f32.mrb[0].mxu0
    %568 = vmatprep.mubr.bf16.mxu0 0
    %569 = vmatmul.mubr.bf16.gmra.mrb[0].mxu0 %v507
    %v570 = vpop.f32.mrb[0].mxu0
    %v571 = vadd.f32 %v481, %v570
    %v572 = vpop.f32.mrb[0].mxu0
    %v573 = vpop.f32.mrb[0].mxu0
    %v574 = vadd.f32 %v486, %v573
    %v575 = vpop.f32.mrb[0].mxu0
    %576 = vdwg.mxu0
    %v577 = vmax.f32 %v547, 0.0
    %v578 = vmax.f32 %v550, 0.0
    %v579 = vmax.f32 %v555, 0.0
    %v580 = vmax.f32 %v558, 0.0
    %v581 = vmax.f32 %v563, 0.0
    %v582 = vmax.f32 %v566, 0.0
    %v583 = vmax.f32 %v571, 0.0
    %v584 = vmax.f32 %v574, 0.0
    %v585 = vld [vmem:[%s7] sm:$0xf]
    %v586 = vld [vmem:[%s7 + $0x4] sm:$0xf]
    %v587 = vld [vmem:[%s7 + $0x8] sm:$0xf]
    %v588 = vld [vmem:[%s7 + $0xc] sm:$0xf]
    %v589 = vld [vmem:[%s7 + $0x10] sm:$0xf]
    %v590 = vld [vmem:[%s7 + $0x14] sm:$0xf]
    %v591 = vld [vmem:[%s7 + $0x18] sm:$0xf]
    %v592 = vld [vmem:[%s7 + $0x1c] sm:$0xf]
    %v593 = vpack.c.bf16 %v578, %v577
    %v594 = vpack.c.bf16 %v580, %v579
    %v595 = vpack.c.bf16 %v582, %v581
    %v596 = vpack.c.bf16 %v584, %v583
    %v597 = vld [vmem:[%s8] sm:$0xff]
    %v598 = vld [vmem:[%s8 + $0x8] sm:$0xff]
    %v599 = vld [vmem:[%s8 + $0x10] sm:$0xff]
    %v600 = vld [vmem:[%s8 + $0x18] sm:$0xff]
    %v601 = vld [vmem:[%s8 + $0x20] sm:$0xff]
    %v602 = vld [vmem:[%s8 + $0x28] sm:$0xff]
    %v603 = vld [vmem:[%s8 + $0x30] sm:$0xff]
    %v604 = vld [vmem:[%s8 + $0x38] sm:$0xff]
    %606 = vset.pattern.permute.xlu0 0
    %607 = vperm.xlu0 %606, %v597
    %v608 = vpop.permute.xlu0 %607
    %611 = vset.pattern.permute.xlu0 0
    %612 = vperm.xlu0 %611, %v598
    %v613 = vpop.permute.xlu0 %612
    %616 = vset.pattern.permute.xlu0 0
    %617 = vperm.xlu0 %616, %v599
    %v618 = vpop.permute.xlu0 %617
    %621 = vset.pattern.permute.xlu0 0
    %622 = vperm.xlu0 %621, %v600
    %v623 = vpop.permute.xlu0 %622
    %626 = vset.pattern.permute.xlu0 0
    %627 = vperm.xlu0 %626, %v601
    %v628 = vpop.permute.xlu0 %627
    %631 = vset.pattern.permute.xlu0 0
    %632 = vperm.xlu0 %631, %v602
    %v633 = vpop.permute.xlu0 %632
    %636 = vset.pattern.permute.xlu0 0
    %637 = vperm.xlu0 %636, %v603
    %v638 = vpop.permute.xlu0 %637
    %641 = vset.pattern.permute.xlu0 0
    %642 = vperm.xlu0 %641, %v604
    %v643 = vpop.permute.xlu0 %642
    %v653 = vunpack.c.l.b16 %v585
    %v654 = vunpack.c.l.b16 %v586
    %v655 = vunpack.c.l.b16 %v587
    %v656 = vunpack.c.l.b16 %v588
    %v657 = vunpack.c.l.b16 %v589
    %v658 = vunpack.c.l.b16 %v590
    %v659 = vunpack.c.l.b16 %v591
    %v660 = vunpack.c.l.b16 %v592
    %v661 = vpack.c.b16 %v654, %v653
    %v662 = vpack.c.b16 %v656, %v655
    %v663 = vpack.c.b16 %v658, %v657
    %v664 = vpack.c.b16 %v660, %v659
    %vm665 = vcmask 523264
    %v667 = vsel %vm665, %v661, 0
    %v670 = vsel %vm665, %v662, 0
    %v673 = vsel %vm665, %v663, 0
    %v676 = vsel %vm665, %v664, 0
    %678 = vmatprep.subr.bf16.mxu0 0
    %679 = vmatpush1.bf16.msra.mxu0 %v593
    %680 = vmatprep.subr.bf16.mxu0 0
    %681 = vmatpush1.bf16.msra.mxu0 %v594
    %682 = vmatprep.subr.bf16.mxu0 0
    %683 = vmatpush1.bf16.msra.mxu0 %v595
    %684 = vmatprep.subr.bf16.mxu0 0
    %685 = vmatpush1.bf16.msra.mxu0 %v596
    %686 = vmatprep.subr.bf16.mxu0 0
    %687 = vmatpush1.bf16.msra.mxu0 0
    %688 = vmatprep.subr.bf16.mxu0 0
    %689 = vmatpush1.bf16.msra.mxu0 0
    %690 = vmatprep.subr.bf16.mxu0 0
    %691 = vmatpush1.bf16.msra.mxu0 0
    %692 = vmatprep.subr.bf16.mxu0 0
    %693 = vmatpush1.bf16.msra.mxu0 0
    %694 = vmatprep.subr.bf16.mxu0 0
    %695 = vmatpush1.bf16.msra.mxu0 0
    %696 = vmatprep.subr.bf16.mxu0 0
    %697 = vmatpush1.bf16.msra.mxu0 0
    %698 = vmatprep.subr.bf16.mxu0 0
    %699 = vmatpush1.bf16.msra.mxu0 0
    %700 = vmatprep.subr.bf16.mxu0 0
    %701 = vmatpush1.bf16.msra.mxu0 0
    %702 = vmatprep.subr.bf16.mxu0 0
    %703 = vmatpush1.bf16.msra.mxu0 0
    %704 = vmatprep.subr.bf16.mxu0 0
    %705 = vmatpush1.bf16.msra.mxu0 0
    %706 = vmatprep.subr.bf16.mxu0 0
    %707 = vmatpush1.bf16.msra.mxu0 0
    %708 = vmatprep.subr.bf16.mxu0 0
    %709 = vmatpush1.bf16.msra.mxu0 0
    %710 = vmatprep.mubr.bf16.mxu0 0
    %711 = vmatmul.mubr.bf16.gmra.mrb[0].mxu0 %v667
    %v712 = vpop.f32.mrb[0].mxu0
    %v713 = vadd.f32 %v608, %v712
    %v714 = vpop.f32.mrb[0].mxu0
    %v715 = vpop.f32.mrb[0].mxu0
    %v716 = vadd.f32 %v613, %v715
    %v717 = vpop.f32.mrb[0].mxu0
    %718 = vmatprep.mubr.bf16.mxu0 0
    %719 = vmatmul.mubr.bf16.gmra.mrb[0].mxu0 %v670
    %v720 = vpop.f32.mrb[0].mxu0
    %v721 = vadd.f32 %v618, %v720
    %v722 = vpop.f32.mrb[0].mxu0
    %v723 = vpop.f32.mrb[0].mxu0
    %v724 = vadd.f32 %v623, %v723
    %v725 = vpop.f32.mrb[0].mxu0
    %726 = vmatprep.mubr.bf16.mxu0 0
    %727 = vmatmul.mubr.bf16.gmra.mrb[0].mxu0 %v673
    %v728 = vpop.f32.mrb[0].mxu0
    %v729 = vadd.f32 %v628, %v728
    %v730 = vpop.f32.mrb[0].mxu0
    %v731 = vpop.f32.mrb[0].mxu0
    %v732 = vadd.f32 %v633, %v731
    %v733 = vpop.f32.mrb[0].mxu0
    %734 = vmatprep.mubr.bf16.mxu0 0
    %735 = vmatmul.mubr.bf16.gmra.mrb[0].mxu0 %v676
    %v736 = vpop.f32.mrb[0].mxu0
    %v737 = vadd.f32 %v638, %v736
    %v738 = vpop.f32.mrb[0].mxu0
    %v739 = vpop.f32.mrb[0].mxu0
    %v740 = vadd.f32 %v643, %v739
    %v741 = vpop.f32.mrb[0].mxu0
    %742 = vdwg.mxu0
    %v743 = vmax.f32 %v713, 0.0
    %v744 = vmax.f32 %v716, 0.0
    %v745 = vmax.f32 %v721, 0.0
    %v746 = vmax.f32 %v724, 0.0
    %v747 = vmax.f32 %v729, 0.0
    %v748 = vmax.f32 %v732, 0.0
    %v749 = vmax.f32 %v737, 0.0
    %v750 = vmax.f32 %v740, 0.0
    %v751 = vld [vmem:[%s9] sm:$0x1]
    %v752 = vpack.c.bf16 %v744, %v743
    %v753 = vpack.c.bf16 %v746, %v745
    %v754 = vpack.c.bf16 %v748, %v747
    %v755 = vpack.c.bf16 %v750, %v749
    %v756 = vld [vmem:[#allocation2] sm:$0x1]
    %758 = vset.pattern.permute.xlu0 0
    %759 = vperm.xlu0 %758, %v756
    %v760 = vpop.permute.xlu0 %759
    %v762 = vlaneseq
    %v763 = vshrl.u32 %v762, 7
    %v764 = vsub.s32 0, %v763
    %v765 = vrot.slane %v760, %v764
    %v767 = vsel %vm665, %v751, 0
    %769 = vmatprep.subr.bf16.mxu0 0
    %770 = vmatpush1.bf16.msra.mxu0 %v752
    %771 = vmatprep.subr.bf16.mxu0 0
    %772 = vmatpush1.bf16.msra.mxu0 %v753
    %773 = vmatprep.subr.bf16.mxu0 0
    %774 = vmatpush1.bf16.msra.mxu0 %v754
    %775 = vmatprep.subr.bf16.mxu0 0
    %776 = vmatpush1.bf16.msra.mxu0 %v755
    %777 = vmatprep.subr.bf16.mxu0 0
    %778 = vmatpush1.bf16.msra.mxu0 0
    %779 = vmatprep.subr.bf16.mxu0 0
    %780 = vmatpush1.bf16.msra.mxu0 0
    %781 = vmatprep.subr.bf16.mxu0 0
    %782 = vmatpush1.bf16.msra.mxu0 0
    %783 = vmatprep.subr.bf16.mxu0 0
    %784 = vmatpush1.bf16.msra.mxu0 0
    %785 = vmatprep.subr.bf16.mxu0 0
    %786 = vmatpush1.bf16.msra.mxu0 0
    %787 = vmatprep.subr.bf16.mxu0 0
    %788 = vmatpush1.bf16.msra.mxu0 0
    %789 = vmatprep.subr.bf16.mxu0 0
    %790 = vmatpush1.bf16.msra.mxu0 0
    %791 = vmatprep.subr.bf16.mxu0 0
    %792 = vmatpush1.bf16.msra.mxu0 0
    %793 = vmatprep.subr.bf16.mxu0 0
    %794 = vmatpush1.bf16.msra.mxu0 0
    %795 = vmatprep.subr.bf16.mxu0 0
    %796 = vmatpush1.bf16.msra.mxu0 0
    %797 = vmatprep.subr.bf16.mxu0 0
    %798 = vmatpush1.bf16.msra.mxu0 0
    %799 = vmatprep.subr.bf16.mxu0 0
    %800 = vmatpush1.bf16.msra.mxu0 0
    %801 = vmatprep.mubr.bf16.mxu0 0
    %802 = vmatmul.mubr.bf16.gmra.mrb[0].mxu0 %v767
    %v803 = vpop.f32.mrb[0].mxu0
    %v804 = vadd.f32 %v765, %v803
    %v805 = vpop.f32.mrb[0].mxu0
    %v806 = vpop.f32.mrb[0].mxu0
    %v807 = vpop.f32.mrb[0].mxu0
    %808 = vdwg.mxu0
    %809 = vst [vmem:[#allocation3] sm:$0x1] %v804
    // Predicated region
    $region46: #{tpu_custom_call.1} parent=1 // pred_check
      _
    $region47: #{tpu_custom_call.1} parent=1 // pred_check_branch
      %811 = sbr.rel (0) target = $region49
    $region48: #{tpu_custom_call.1} parent=1 // pred_region
      %s813 = ssub.s32 16, 16
      %814 = vsyncadd [#allocation4], %s813
      %s816 = sshll.u32 [#allocation3], 4
      %s817 = int_to_ptr.vmem [resolvable:$true] %s816
      %819 = dma.vmem_to_hbm [thread:$0]  %s817, 16, %s11, [#allocation4]
    $region49: #{tpu_custom_call.1} parent=1 // pred_fallthru
      _
    // Predicated region
    $region50: #{tpu_custom_call.1} parent=1 // pred_check
      _
    $region51: #{tpu_custom_call.1} parent=1 // pred_check_branch
      %821 = sbr.rel (0) target = $region53
    $region52: #{tpu_custom_call.1} parent=1 // pred_region
      %822 = dma.done [#allocation4], 16
    $region53: #{tpu_custom_call.1} parent=1 // pred_fallthru
      _
    %823 = vsyncpa [#allocation4], 1

</llo_original>
